<compile_context>
chip_gen: v5e
topology: v5e:2x2
jax: 0.10.0
libtpu: 0.0.40
codegen_flags: <defaults>
</compile_context>

<pallas_src>
import functools

import jax
import jax.numpy as jnp
from jax.experimental import pallas as pl
from jax.experimental.pallas import tpu as pltpu


def _round_up(x, m):
    return (x + m - 1) // m * m


def lstm_kernel(lens_ref, emb_ref, wx_ref, wh_ref, b_ref, wdec_ref, bdec_ref,
                out_ref, gx_ref):
    """One batch block of the whole forward pass.

    lens_ref : (bb, 1)       int32    sequence lengths (padded rows use 1)
    emb_ref  : (T, bb, E)    mm_dtype embedded tokens
    wx_ref   : (E, 4*Hg)     mm_dtype W_ih^T, gate-packed
    wh_ref   : (Hg, 4*Hg)    mm_dtype W_hh^T, gate-packed / row-padded
    b_ref    : (1, 4*Hg)     f32      b_ih + b_hh, gate-packed
    wdec_ref : (Hg, 1)       mm_dtype single_decoder.weight^T, row-padded
    bdec_ref : (1, 1)        f32      single_decoder.bias
    out_ref  : (bb, 1)       f32      decoded score at t = length-1
    gx_ref   : (T*bb, 4*Hg)  f32      VMEM scratch: input-side gate pre-acts
    """
    T, bb, E = emb_ref.shape
    Hg = wh_ref.shape[0]
    mm_dtype = wx_ref.dtype

    # ---- Input projection hoisted out of the recurrence: ONE matmul with
    # M = T*bb rows (real MXU row utilization, pipelines with DMA) instead of
    # T tiny M=bb matmuls.  Bias folded in here once (no per-step broadcast).
    x_all = emb_ref[...].reshape(T * bb, E)
    gx_ref[...] = (jnp.dot(x_all, wx_ref[...],
                           preferred_element_type=jnp.float32) + b_ref[...])

    wh = wh_ref[...]
    last_t = lens_ref[...] - 1                      # (bb, 1)

    # TODO(synk): on v6e/v7x, hold W_h in the MXU across steps via
    # pltpu.matmul_push_rhs / matmul_acc_lhs / matmul_pop to avoid re-streaming
    # the time-invariant RHS every step.

    def step(t, carry):
        h, c, h_last = carry                        # (bb, Hg) f32 each
        row0 = pl.multiple_of(t * bb, bb)
        # Only the recurrent projection remains inside the loop.
        gates = gx_ref[pl.ds(row0, bb), :] + jnp.dot(
            h.astype(mm_dtype), wh, preferred_element_type=jnp.float32)

        if Hg % 128 == 0:
            # Lane-aligned gate blocks: activate each gate slice exactly once.
            i_g = jax.nn.sigmoid(gates[:, 0 * Hg:1 * Hg])
            f_g = jax.nn.sigmoid(gates[:, 1 * Hg:2 * Hg])
            g_g = jnp.tanh(gates[:, 2 * Hg:3 * Hg])
            o_g = jax.nn.sigmoid(gates[:, 3 * Hg:4 * Hg])
        else:
            # Small H: the 4 gates are packed into few lane tiles; one sigmoid
            # + one tanh over the whole packed vector beats 4 sub-tile EUP ops.
            sg = jax.nn.sigmoid(gates)
            tg = jnp.tanh(gates)
            i_g = sg[:, 0 * Hg:1 * Hg]
            f_g = sg[:, 1 * Hg:2 * Hg]
            g_g = tg[:, 2 * Hg:3 * Hg]
            o_g = sg[:, 3 * Hg:4 * Hg]

        c_new = f_g * c + i_g * g_g
        h_new = o_g * jnp.tanh(c_new)
        # torch.gather(unpacked, 0, l-1): keep the hidden state at t = len-1.
        h_last = jnp.where(last_t == t, h_new, h_last)   # cheap VPU select
        return h_new, c_new, h_last

    zeros = jnp.zeros((bb, Hg), jnp.float32)
    unroll = True if T <= 32 else 8
    _, _, h_last = jax.lax.fori_loop(0, T, step, (zeros, zeros, zeros),
                                     unroll=unroll)

    # nn.Dropout(0.5) is identity in eval mode; single_decoder runs ONCE.
    # TODO(synk): train-mode dropout(0.5) not implemented (eval parity only).
    out_ref[...] = (jnp.dot(h_last.astype(mm_dtype), wdec_ref[...],
                            preferred_element_type=jnp.float32) + bdec_ref[...])


def _pack_params(params, Hg, mm_dtype):
    """Build gate-packed / padded kernel operands from PyTorch-layout params."""
    w_ih, w_hh = params["w_ih"], params["w_hh"]        # (4H, E), (4H, H)
    H = w_hh.shape[1]

    def pack_gates(w_t, rows):
        # (rows, 4H) -> (rows, 4*Hg): pad each H-wide gate block up to Hg lanes.
        w4 = w_t.reshape(rows, 4, H)
        w4 = jnp.pad(w4, ((0, 0), (0, 0), (0, Hg - H)))
        return w4.reshape(rows, 4 * Hg)

    w_x = pack_gates(w_ih.T, w_ih.shape[1]).astype(mm_dtype)        # (E, 4*Hg)
    w_h = jnp.pad(pack_gates(w_hh.T, H),
                  ((0, Hg - H), (0, 0))).astype(mm_dtype)           # (Hg, 4*Hg)

    b = (params["b_ih"] + params["b_hh"]).reshape(4, H)
    bias = jnp.pad(b, ((0, 0), (0, Hg - H))).reshape(1, 4 * Hg).astype(jnp.float32)

    w_dec = jnp.pad(params["w_dec"].T, ((0, Hg - H), (0, 0))).astype(mm_dtype)
    b_dec = params["b_dec"].reshape(1, 1).astype(jnp.float32)

    emb_W = params["emb_W"].astype(mm_dtype)                        # (vocab, E)
    return emb_W, w_x, w_h, bias, w_dec, b_dec


def custom_lstm_forward(tokens, lengths, params, *, use_bf16_weights=True,
                        batch_block=256):
    """tokens: (T, B) int32 (batch_first=False), lengths: (B,) int32 -> (B,) f32.

    Lengths must be >= 1 (pack_padded_sequence rejects 0 in PyTorch); a length
    of 0 here silently yields the decoder bias instead of erroring.  Padded
    positions (t >= length) still pass through the recurrence, but the gathered
    output at t = length-1 matches packed-sequence semantics exactly.
    """
    T, B = tokens.shape
    H = params["w_hh"].shape[1]

    mm_dtype = jnp.bfloat16 if use_bf16_weights else jnp.float32
    SUB = 16 if use_bf16_weights else 8            # sublane packing of mm_dtype
    # Gate-block width: lane-aligned (multiple of 128) for large H; for small H
    # pack the 4 gates into as few lane tiles as possible (H=32 -> 4*Hg = 128).
    Hg = _round_up(H, 128) if H >= 128 else _round_up(H, 32)

    # Batch blocking: one grid step per bb rows, "parallel" so v7x's two
    # TensorCores split the batch (no-op on v5e/v6e single-TC chips).
    bb = min(_round_up(B, SUB), _round_up(batch_block, SUB))
    Bp = _round_up(B, bb)

    emb_W, w_x, w_h, bias, w_dec, b_dec = _pack_params(params, Hg, mm_dtype)

    # Padded batch rows use token 0 / length 1 and are sliced off below.
    tokens_p = jnp.pad(tokens.astype(jnp.int32), ((0, 0), (0, Bp - B)))
    lens_p = jnp.pad(lengths.astype(jnp.int32), (0, Bp - B), constant_values=1)

    # Embedding lookup (padding_idx=0 row is zero) stays in the wrapper; the
    # (T, bb, E) slab per block is small and DMA'd by BlockSpec.
    # TODO(synk): for large vocab/T, gather rows in-kernel (scalar-prefetched
    # token ids + per-row DMA) and chunk the time axis (pltpu.emit_pipeline)
    # so slab + gate scratch fit v7x's 64 MiB VMEM (vmem_limit_bytes=...).
    emb = emb_W[tokens_p]                                   # (T, Bp, E) mm_dtype

    num_blocks = Bp // bb
    out = pl.pallas_call(
        lstm_kernel,
        out_shape=jax.ShapeDtypeStruct((Bp, 1), jnp.float32),
        grid=(num_blocks,),
        in_specs=[
            pl.BlockSpec((bb, 1), lambda i: (i, 0)),          # lengths
            pl.BlockSpec((T, bb, emb.shape[2]), lambda i: (0, i, 0)),  # emb
            pl.BlockSpec(w_x.shape, lambda i: (0, 0)),        # W_ih^T (resident)
            pl.BlockSpec(w_h.shape, lambda i: (0, 0)),        # W_hh^T (resident)
            pl.BlockSpec(bias.shape, lambda i: (0, 0)),       # bias
            pl.BlockSpec(w_dec.shape, lambda i: (0, 0)),      # decoder weight
            pl.BlockSpec(b_dec.shape, lambda i: (0, 0)),      # decoder bias
        ],
        out_specs=pl.BlockSpec((bb, 1), lambda i: (i, 0)),
        scratch_shapes=[pltpu.VMEM((T * bb, 4 * Hg), jnp.float32)],
        compiler_params=pltpu.CompilerParams(
            dimension_semantics=("parallel",)),
    )(lens_p.reshape(Bp, 1), emb, w_x, w_h, bias, w_dec, b_dec)

    return out[:B, 0]                                        # output.view(-1)


def lstm_reference(tokens, lengths, params):
    """Pure-JAX f32 reference of the module's forward (eval mode)."""
    emb = params["emb_W"][tokens]                            # (T, B, E)
    B = tokens.shape[1]
    H = params["w_hh"].shape[1]
    w_ih, w_hh = params["w_ih"], params["w_hh"]
    b = params["b_ih"] + params["b_hh"]

    def step(carry, x_t):
        h, c = carry
        gates = x_t @ w_ih.T + h @ w_hh.T + b
        i, f, g, o = jnp.split(gates, 4, axis=1)
        c = jax.nn.sigmoid(f) * c + jax.nn.sigmoid(i) * jnp.tanh(g)
        h = jax.nn.sigmoid(o) * jnp.tanh(c)
        return (h, c), h

    init = (jnp.zeros((B, H), jnp.float32), jnp.zeros((B, H), jnp.float32))
    _, hs = jax.lax.scan(step, init, emb)                    # (T, B, H)
    h_last = hs[lengths - 1, jnp.arange(B)]                  # (B, H)
    return (h_last @ params["w_dec"].T + params["b_dec"]).reshape(-1)


def init_params(key, vocab_len, emb_size, n_hidden):
    """Deterministic synthetic init matching the module's parameter shapes
    (PyTorch layout: weight_ih (4H,E), weight_hh (4H,H), gate order i,f,g,o)."""
    ks = jax.random.split(key, 7)
    H, E = n_hidden, emb_size
    s = 1.0 / (H ** 0.5)

    emb_W = jax.random.normal(ks[0], (vocab_len, E), jnp.float32)
    emb_W = emb_W.at[0].set(0.0)                             # padding_idx=0

    return {
        "emb_W": emb_W,
        "w_ih": jax.random.uniform(ks[1], (4 * H, E), jnp.float32, -s, s),
        "w_hh": jax.random.uniform(ks[2], (4 * H, H), jnp.float32, -s, s),
        "b_ih": jax.random.uniform(ks[3], (4 * H,), jnp.float32, -s, s),
        "b_hh": jax.random.uniform(ks[4], (4 * H,), jnp.float32, -s, s),
        "w_dec": jax.random.uniform(ks[5], (1, H), jnp.float32, -s, s),
        "b_dec": jax.random.uniform(ks[6], (1,), jnp.float32, -s, s),
    }


if __name__ == "__main__":
    # Small shapes consistent with the module's forward: seq=8, batch=2,
    # emb=32, hidden=32, n_output=1.
    T, B, E, H = 8, 2, 32, 32
    VOCAB = 50

    key = jax.random.PRNGKey(0)
    k_tok, k_par = jax.random.split(key)

    params = init_params(k_par, VOCAB, E, H)

    tokens = jax.random.randint(k_tok, (T, B), 1, VOCAB, dtype=jnp.int32)
    lengths = jnp.array([8, 5], dtype=jnp.int32)   # sorted descending (packed-seq convention)
    # zero-out padded positions (what pad_packed_sequence padding looks like)
    t_idx = jnp.arange(T, dtype=jnp.int32)[:, None]
    tokens = jnp.where(t_idx < lengths[None, :], tokens, 0)

    # f32-parity kernel vs pure-JAX reference (tight tolerance).
    ref = lstm_reference(tokens, lengths, params)
    out_f32 = jax.jit(functools.partial(custom_lstm_forward,
                                        use_bf16_weights=False))(
        tokens, lengths, params)
    out_f32 = jax.block_until_ready(out_f32)
    assert out_f32.shape == (B,)
    assert jnp.allclose(out_f32, ref, atol=1e-4, rtol=1e-3), (out_f32, ref)

    # Default fast path: bf16 MXU operands.
    out = jax.jit(custom_lstm_forward)(tokens, lengths, params)
    out = jax.block_until_ready(out)
    assert out.shape == (B,)
    print("KERNEL_OK")
</pallas_src>

<mosaic_0001>
module attributes {stable_mosaic.version = 11 : i64} {
  func.func @lstm_kernel(%arg0: i32, %arg1: memref<8x1xi32, #tpu.memory_space<vmem>>, %arg2: memref<8x8x32xf32, #tpu.memory_space<vmem>>, %arg3: memref<32x128xf32, #tpu.memory_space<vmem>>, %arg4: memref<32x128xf32, #tpu.memory_space<vmem>>, %arg5: memref<1x128xf32, #tpu.memory_space<vmem>>, %arg6: memref<32x1xf32, #tpu.memory_space<vmem>>, %arg7: memref<1x1xf32, #tpu.memory_space<vmem>>, %arg8: memref<8x1xf32, #tpu.memory_space<vmem>>, %arg9: memref<64x128xf32, #tpu.memory_space<vmem>>) attributes {dimension_semantics = [#tpu.dimension_semantics<parallel>], iteration_bounds = array<i64: 1>, scalar_prefetch = 0 : i64, scratch_operands = 1 : i64, tpu.core_type = #tpu.core_type<tc>, window_params = [{transform_indices = @transform_0, window_bounds = array<i64: 8, 1>}, {transform_indices = @transform_1, window_bounds = array<i64: 8, 8, 32>}, {pipeline_mode = #tpu.pipeline_mode<synchronous>, transform_indices = @transform_2, window_bounds = array<i64: 32, 128>}, {pipeline_mode = #tpu.pipeline_mode<synchronous>, transform_indices = @transform_3, window_bounds = array<i64: 32, 128>}, {pipeline_mode = #tpu.pipeline_mode<synchronous>, transform_indices = @transform_4, window_bounds = array<i64: 1, 128>}, {pipeline_mode = #tpu.pipeline_mode<synchronous>, transform_indices = @transform_5, window_bounds = array<i64: 32, 1>}, {pipeline_mode = #tpu.pipeline_mode<synchronous>, transform_indices = @transform_6, window_bounds = array<i64: 1, 1>}, {transform_indices = @transform_7, window_bounds = array<i64: 8, 1>}]} {
    %c0 = arith.constant 0 : index
    %c0_0 = arith.constant 0 : index
    %c0_1 = arith.constant 0 : index
    %0 = vector.load %arg2[%c0, %c0_0, %c0_1] : memref<8x8x32xf32, #tpu.memory_space<vmem>>, vector<8x8x32xf32>
    %1 = vector.shape_cast %0 : vector<8x8x32xf32> to vector<64x32xf32>
    %c0_2 = arith.constant 0 : index
    %c0_3 = arith.constant 0 : index
    %2 = vector.load %arg3[%c0_2, %c0_3] : memref<32x128xf32, #tpu.memory_space<vmem>>, vector<32x128xf32>
    %cst = arith.constant dense<0.000000e+00> : vector<64x128xf32>
    %3 = tpu.matmul %1, %2, %cst {dimension_numbers = #tpu.dot_dimension_numbers<[1], [0], [0], [1], [0, 0, 1, 1], [], []>} : vector<64x32xf32>, vector<32x128xf32>, vector<64x128xf32> -> vector<64x128xf32>
    %c0_4 = arith.constant 0 : index
    %c0_5 = arith.constant 0 : index
    %4 = vector.load %arg5[%c0_4, %c0_5] : memref<1x128xf32, #tpu.memory_space<vmem>>, vector<1x128xf32>
    %5 = vector.broadcast %4 : vector<1x128xf32> to vector<64x128xf32>
    %6 = arith.addf %3, %5 : vector<64x128xf32>
    %c0_6 = arith.constant 0 : index
    %c0_7 = arith.constant 0 : index
    %7 = vector.load %arg9[%c0_6, %c0_7] : memref<64x128xf32, #tpu.memory_space<vmem>>, vector<64x128xf32>
    tpu.vector_store %arg9[%c0_6, %c0_7], %6 {strides = array<i32>} : memref<64x128xf32, #tpu.memory_space<vmem>>, vector<64x128xf32>,
    %c0_8 = arith.constant 0 : index
    %c0_9 = arith.constant 0 : index
    %8 = vector.load %arg4[%c0_8, %c0_9] : memref<32x128xf32, #tpu.memory_space<vmem>>, vector<32x128xf32>
    %c0_10 = arith.constant 0 : index
    %c0_11 = arith.constant 0 : index
    %9 = vector.load %arg1[%c0_10, %c0_11] : memref<8x1xi32, #tpu.memory_space<vmem>>, vector<8x1xi32>
    %c1_i32 = arith.constant 1 : i32
    %10 = vector.broadcast %c1_i32 : i32 to vector<8x1xi32>
    %11 = arith.subi %9, %10 : vector<8x1xi32>
    %cst_12 = arith.constant 0.000000e+00 : f32
    %12 = vector.broadcast %cst_12 : f32 to vector<8x32xf32>
    %c0_i32 = arith.constant 0 : i32
    %c8_i32 = arith.constant 8 : i32
    %13 = arith.muli %c0_i32, %c8_i32 : i32
    %14 = tpu.assume_multiple %13, 8 : i32
    %15 = arith.index_cast %14 : i32 to index
    %c0_13 = arith.constant 0 : index
    %16 = vector.load %arg9[%15, %c0_13] : memref<64x128xf32, #tpu.memory_space<vmem>>, vector<8x128xf32>
    %cst_14 = arith.constant dense<0.000000e+00> : vector<8x128xf32>
    %17 = tpu.matmul %12, %8, %cst_14 {dimension_numbers = #tpu.dot_dimension_numbers<[1], [0], [0], [1], [0, 0, 1, 1], [], []>} : vector<8x32xf32>, vector<32x128xf32>, vector<8x128xf32> -> vector<8x128xf32>
    %18 = arith.addf %16, %17 : vector<8x128xf32>
    %19 = arith.negf %18 : vector<8x128xf32>
    %20 = math.exp %19 : vector<8x128xf32>
    %cst_15 = arith.constant 1.000000e+00 : f32
    %21 = vector.broadcast %cst_15 : f32 to vector<8x128xf32>
    %22 = arith.addf %21, %20 : vector<8x128xf32>
    %23 = arith.divf %21, %22 : vector<8x128xf32>
    %24 = math.tanh %18 : vector<8x128xf32>
    %25 = vector.extract_strided_slice %23 {offsets = [0, 0], sizes = [8, 32], strides = [1, 1]} : vector<8x128xf32> to vector<8x32xf32>
    %26 = vector.extract_strided_slice %23 {offsets = [0, 32], sizes = [8, 32], strides = [1, 1]} : vector<8x128xf32> to vector<8x32xf32>
    %27 = vector.extract_strided_slice %24 {offsets = [0, 64], sizes = [8, 32], strides = [1, 1]} : vector<8x128xf32> to vector<8x32xf32>
    %28 = vector.extract_strided_slice %23 {offsets = [0, 96], sizes = [8, 32], strides = [1, 1]} : vector<8x128xf32> to vector<8x32xf32>
    %29 = arith.mulf %26, %12 : vector<8x32xf32>
    %30 = arith.mulf %25, %27 : vector<8x32xf32>
    %31 = arith.addf %29, %30 : vector<8x32xf32>
    %32 = math.tanh %31 : vector<8x32xf32>
    %33 = arith.mulf %28, %32 : vector<8x32xf32>
    %34 = vector.broadcast %c0_i32 : i32 to vector<8x1xi32>
    %35 = arith.cmpi eq, %11, %34 : vector<8x1xi32>
    %36 = vector.shape_cast %35 : vector<8x1xi1> to vector<8x1xi1>
    %37 = vector.broadcast %36 : vector<8x1xi1> to vector<8x32xi1>
    %38 = arith.select %37, %33, %12 : vector<8x32xi1>, vector<8x32xf32>
    %c1_i32_16 = arith.constant 1 : i32
    %c8_i32_17 = arith.constant 8 : i32
    %39 = arith.muli %c1_i32_16, %c8_i32_17 : i32
    %40 = tpu.assume_multiple %39, 8 : i32
    %41 = arith.index_cast %40 : i32 to index
    %c0_18 = arith.constant 0 : index
    %42 = vector.load %arg9[%41, %c0_18] : memref<64x128xf32, #tpu.memory_space<vmem>>, vector<8x128xf32>
    %cst_19 = arith.constant dense<0.000000e+00> : vector<8x128xf32>
    %43 = tpu.matmul %33, %8, %cst_19 {dimension_numbers = #tpu.dot_dimension_numbers<[1], [0], [0], [1], [0, 0, 1, 1], [], []>} : vector<8x32xf32>, vector<32x128xf32>, vector<8x128xf32> -> vector<8x128xf32>
    %44 = arith.addf %42, %43 : vector<8x128xf32>
    %45 = arith.negf %44 : vector<8x128xf32>
    %46 = math.exp %45 : vector<8x128xf32>
    %cst_20 = arith.constant 1.000000e+00 : f32
    %47 = vector.broadcast %cst_20 : f32 to vector<8x128xf32>
    %48 = arith.addf %47, %46 : vector<8x128xf32>
    %49 = arith.divf %47, %48 : vector<8x128xf32>
    %50 = math.tanh %44 : vector<8x128xf32>
    %51 = vector.extract_strided_slice %49 {offsets = [0, 0], sizes = [8, 32], strides = [1, 1]} : vector<8x128xf32> to vector<8x32xf32>
    %52 = vector.extract_strided_slice %49 {offsets = [0, 32], sizes = [8, 32], strides = [1, 1]} : vector<8x128xf32> to vector<8x32xf32>
    %53 = vector.extract_strided_slice %50 {offsets = [0, 64], sizes = [8, 32], strides = [1, 1]} : vector<8x128xf32> to vector<8x32xf32>
    %54 = vector.extract_strided_slice %49 {offsets = [0, 96], sizes = [8, 32], strides = [1, 1]} : vector<8x128xf32> to vector<8x32xf32>
    %55 = arith.mulf %52, %31 : vector<8x32xf32>
    %56 = arith.mulf %51, %53 : vector<8x32xf32>
    %57 = arith.addf %55, %56 : vector<8x32xf32>
    %58 = math.tanh %57 : vector<8x32xf32>
    %59 = arith.mulf %54, %58 : vector<8x32xf32>
    %60 = vector.broadcast %c1_i32_16 : i32 to vector<8x1xi32>
    %61 = arith.cmpi eq, %11, %60 : vector<8x1xi32>
    %62 = vector.shape_cast %61 : vector<8x1xi1> to vector<8x1xi1>
    %63 = vector.broadcast %62 : vector<8x1xi1> to vector<8x32xi1>
    %64 = arith.select %63, %59, %38 : vector<8x32xi1>, vector<8x32xf32>
    %c2_i32 = arith.constant 2 : i32
    %c8_i32_21 = arith.constant 8 : i32
    %65 = arith.muli %c2_i32, %c8_i32_21 : i32
    %66 = tpu.assume_multiple %65, 8 : i32
    %67 = arith.index_cast %66 : i32 to index
    %c0_22 = arith.constant 0 : index
    %68 = vector.load %arg9[%67, %c0_22] : memref<64x128xf32, #tpu.memory_space<vmem>>, vector<8x128xf32>
    %cst_23 = arith.constant dense<0.000000e+00> : vector<8x128xf32>
    %69 = tpu.matmul %59, %8, %cst_23 {dimension_numbers = #tpu.dot_dimension_numbers<[1], [0], [0], [1], [0, 0, 1, 1], [], []>} : vector<8x32xf32>, vector<32x128xf32>, vector<8x128xf32> -> vector<8x128xf32>
    %70 = arith.addf %68, %69 : vector<8x128xf32>
    %71 = arith.negf %70 : vector<8x128xf32>
    %72 = math.exp %71 : vector<8x128xf32>
    %cst_24 = arith.constant 1.000000e+00 : f32
    %73 = vector.broadcast %cst_24 : f32 to vector<8x128xf32>
    %74 = arith.addf %73, %72 : vector<8x128xf32>
    %75 = arith.divf %73, %74 : vector<8x128xf32>
    %76 = math.tanh %70 : vector<8x128xf32>
    %77 = vector.extract_strided_slice %75 {offsets = [0, 0], sizes = [8, 32], strides = [1, 1]} : vector<8x128xf32> to vector<8x32xf32>
    %78 = vector.extract_strided_slice %75 {offsets = [0, 32], sizes = [8, 32], strides = [1, 1]} : vector<8x128xf32> to vector<8x32xf32>
    %79 = vector.extract_strided_slice %76 {offsets = [0, 64], sizes = [8, 32], strides = [1, 1]} : vector<8x128xf32> to vector<8x32xf32>
    %80 = vector.extract_strided_slice %75 {offsets = [0, 96], sizes = [8, 32], strides = [1, 1]} : vector<8x128xf32> to vector<8x32xf32>
    %81 = arith.mulf %78, %57 : vector<8x32xf32>
    %82 = arith.mulf %77, %79 : vector<8x32xf32>
    %83 = arith.addf %81, %82 : vector<8x32xf32>
    %84 = math.tanh %83 : vector<8x32xf32>
    %85 = arith.mulf %80, %84 : vector<8x32xf32>
    %86 = vector.broadcast %c2_i32 : i32 to vector<8x1xi32>
    %87 = arith.cmpi eq, %11, %86 : vector<8x1xi32>
    %88 = vector.shape_cast %87 : vector<8x1xi1> to vector<8x1xi1>
    %89 = vector.broadcast %88 : vector<8x1xi1> to vector<8x32xi1>
    %90 = arith.select %89, %85, %64 : vector<8x32xi1>, vector<8x32xf32>
    %c3_i32 = arith.constant 3 : i32
    %c8_i32_25 = arith.constant 8 : i32
    %91 = arith.muli %c3_i32, %c8_i32_25 : i32
    %92 = tpu.assume_multiple %91, 8 : i32
    %93 = arith.index_cast %92 : i32 to index
    %c0_26 = arith.constant 0 : index
    %94 = vector.load %arg9[%93, %c0_26] : memref<64x128xf32, #tpu.memory_space<vmem>>, vector<8x128xf32>
    %cst_27 = arith.constant dense<0.000000e+00> : vector<8x128xf32>
    %95 = tpu.matmul %85, %8, %cst_27 {dimension_numbers = #tpu.dot_dimension_numbers<[1], [0], [0], [1], [0, 0, 1, 1], [], []>} : vector<8x32xf32>, vector<32x128xf32>, vector<8x128xf32> -> vector<8x128xf32>
    %96 = arith.addf %94, %95 : vector<8x128xf32>
    %97 = arith.negf %96 : vector<8x128xf32>
    %98 = math.exp %97 : vector<8x128xf32>
    %cst_28 = arith.constant 1.000000e+00 : f32
    %99 = vector.broadcast %cst_28 : f32 to vector<8x128xf32>
    %100 = arith.addf %99, %98 : vector<8x128xf32>
    %101 = arith.divf %99, %100 : vector<8x128xf32>
    %102 = math.tanh %96 : vector<8x128xf32>
    %103 = vector.extract_strided_slice %101 {offsets = [0, 0], sizes = [8, 32], strides = [1, 1]} : vector<8x128xf32> to vector<8x32xf32>
    %104 = vector.extract_strided_slice %101 {offsets = [0, 32], sizes = [8, 32], strides = [1, 1]} : vector<8x128xf32> to vector<8x32xf32>
    %105 = vector.extract_strided_slice %102 {offsets = [0, 64], sizes = [8, 32], strides = [1, 1]} : vector<8x128xf32> to vector<8x32xf32>
    %106 = vector.extract_strided_slice %101 {offsets = [0, 96], sizes = [8, 32], strides = [1, 1]} : vector<8x128xf32> to vector<8x32xf32>
    %107 = arith.mulf %104, %83 : vector<8x32xf32>
    %108 = arith.mulf %103, %105 : vector<8x32xf32>
    %109 = arith.addf %107, %108 : vector<8x32xf32>
    %110 = math.tanh %109 : vector<8x32xf32>
    %111 = arith.mulf %106, %110 : vector<8x32xf32>
    %112 = vector.broadcast %c3_i32 : i32 to vector<8x1xi32>
    %113 = arith.cmpi eq, %11, %112 : vector<8x1xi32>
    %114 = vector.shape_cast %113 : vector<8x1xi1> to vector<8x1xi1>
    %115 = vector.broadcast %114 : vector<8x1xi1> to vector<8x32xi1>
    %116 = arith.select %115, %111, %90 : vector<8x32xi1>, vector<8x32xf32>
    %c4_i32 = arith.constant 4 : i32
    %c8_i32_29 = arith.constant 8 : i32
    %117 = arith.muli %c4_i32, %c8_i32_29 : i32
    %118 = tpu.assume_multiple %117, 8 : i32
    %119 = arith.index_cast %118 : i32 to index
    %c0_30 = arith.constant 0 : index
    %120 = vector.load %arg9[%119, %c0_30] : memref<64x128xf32, #tpu.memory_space<vmem>>, vector<8x128xf32>
    %cst_31 = arith.constant dense<0.000000e+00> : vector<8x128xf32>
    %121 = tpu.matmul %111, %8, %cst_31 {dimension_numbers = #tpu.dot_dimension_numbers<[1], [0], [0], [1], [0, 0, 1, 1], [], []>} : vector<8x32xf32>, vector<32x128xf32>, vector<8x128xf32> -> vector<8x128xf32>
    %122 = arith.addf %120, %121 : vector<8x128xf32>
    %123 = arith.negf %122 : vector<8x128xf32>
    %124 = math.exp %123 : vector<8x128xf32>
    %cst_32 = arith.constant 1.000000e+00 : f32
    %125 = vector.broadcast %cst_32 : f32 to vector<8x128xf32>
    %126 = arith.addf %125, %124 : vector<8x128xf32>
    %127 = arith.divf %125, %126 : vector<8x128xf32>
    %128 = math.tanh %122 : vector<8x128xf32>
    %129 = vector.extract_strided_slice %127 {offsets = [0, 0], sizes = [8, 32], strides = [1, 1]} : vector<8x128xf32> to vector<8x32xf32>
    %130 = vector.extract_strided_slice %127 {offsets = [0, 32], sizes = [8, 32], strides = [1, 1]} : vector<8x128xf32> to vector<8x32xf32>
    %131 = vector.extract_strided_slice %128 {offsets = [0, 64], sizes = [8, 32], strides = [1, 1]} : vector<8x128xf32> to vector<8x32xf32>
    %132 = vector.extract_strided_slice %127 {offsets = [0, 96], sizes = [8, 32], strides = [1, 1]} : vector<8x128xf32> to vector<8x32xf32>
    %133 = arith.mulf %130, %109 : vector<8x32xf32>
    %134 = arith.mulf %129, %131 : vector<8x32xf32>
    %135 = arith.addf %133, %134 : vector<8x32xf32>
    %136 = math.tanh %135 : vector<8x32xf32>
    %137 = arith.mulf %132, %136 : vector<8x32xf32>
    %138 = vector.broadcast %c4_i32 : i32 to vector<8x1xi32>
    %139 = arith.cmpi eq, %11, %138 : vector<8x1xi32>
    %140 = vector.shape_cast %139 : vector<8x1xi1> to vector<8x1xi1>
    %141 = vector.broadcast %140 : vector<8x1xi1> to vector<8x32xi1>
    %142 = arith.select %141, %137, %116 : vector<8x32xi1>, vector<8x32xf32>
    %c5_i32 = arith.constant 5 : i32
    %c8_i32_33 = arith.constant 8 : i32
    %143 = arith.muli %c5_i32, %c8_i32_33 : i32
    %144 = tpu.assume_multiple %143, 8 : i32
    %145 = arith.index_cast %144 : i32 to index
    %c0_34 = arith.constant 0 : index
    %146 = vector.load %arg9[%145, %c0_34] : memref<64x128xf32, #tpu.memory_space<vmem>>, vector<8x128xf32>
    %cst_35 = arith.constant dense<0.000000e+00> : vector<8x128xf32>
    %147 = tpu.matmul %137, %8, %cst_35 {dimension_numbers = #tpu.dot_dimension_numbers<[1], [0], [0], [1], [0, 0, 1, 1], [], []>} : vector<8x32xf32>, vector<32x128xf32>, vector<8x128xf32> -> vector<8x128xf32>
    %148 = arith.addf %146, %147 : vector<8x128xf32>
    %149 = arith.negf %148 : vector<8x128xf32>
    %150 = math.exp %149 : vector<8x128xf32>
    %cst_36 = arith.constant 1.000000e+00 : f32
    %151 = vector.broadcast %cst_36 : f32 to vector<8x128xf32>
    %152 = arith.addf %151, %150 : vector<8x128xf32>
    %153 = arith.divf %151, %152 : vector<8x128xf32>
    %154 = math.tanh %148 : vector<8x128xf32>
    %155 = vector.extract_strided_slice %153 {offsets = [0, 0], sizes = [8, 32], strides = [1, 1]} : vector<8x128xf32> to vector<8x32xf32>
    %156 = vector.extract_strided_slice %153 {offsets = [0, 32], sizes = [8, 32], strides = [1, 1]} : vector<8x128xf32> to vector<8x32xf32>
    %157 = vector.extract_strided_slice %154 {offsets = [0, 64], sizes = [8, 32], strides = [1, 1]} : vector<8x128xf32> to vector<8x32xf32>
    %158 = vector.extract_strided_slice %153 {offsets = [0, 96], sizes = [8, 32], strides = [1, 1]} : vector<8x128xf32> to vector<8x32xf32>
    %159 = arith.mulf %156, %135 : vector<8x32xf32>
    %160 = arith.mulf %155, %157 : vector<8x32xf32>
    %161 = arith.addf %159, %160 : vector<8x32xf32>
    %162 = math.tanh %161 : vector<8x32xf32>
    %163 = arith.mulf %158, %162 : vector<8x32xf32>
    %164 = vector.broadcast %c5_i32 : i32 to vector<8x1xi32>
    %165 = arith.cmpi eq, %11, %164 : vector<8x1xi32>
    %166 = vector.shape_cast %165 : vector<8x1xi1> to vector<8x1xi1>
    %167 = vector.broadcast %166 : vector<8x1xi1> to vector<8x32xi1>
    %168 = arith.select %167, %163, %142 : vector<8x32xi1>, vector<8x32xf32>
    %c6_i32 = arith.constant 6 : i32
    %c8_i32_37 = arith.constant 8 : i32
    %169 = arith.muli %c6_i32, %c8_i32_37 : i32
    %170 = tpu.assume_multiple %169, 8 : i32
    %171 = arith.index_cast %170 : i32 to index
    %c0_38 = arith.constant 0 : index
    %172 = vector.load %arg9[%171, %c0_38] : memref<64x128xf32, #tpu.memory_space<vmem>>, vector<8x128xf32>
    %cst_39 = arith.constant dense<0.000000e+00> : vector<8x128xf32>
    %173 = tpu.matmul %163, %8, %cst_39 {dimension_numbers = #tpu.dot_dimension_numbers<[1], [0], [0], [1], [0, 0, 1, 1], [], []>} : vector<8x32xf32>, vector<32x128xf32>, vector<8x128xf32> -> vector<8x128xf32>
    %174 = arith.addf %172, %173 : vector<8x128xf32>
    %175 = arith.negf %174 : vector<8x128xf32>
    %176 = math.exp %175 : vector<8x128xf32>
    %cst_40 = arith.constant 1.000000e+00 : f32
    %177 = vector.broadcast %cst_40 : f32 to vector<8x128xf32>
    %178 = arith.addf %177, %176 : vector<8x128xf32>
    %179 = arith.divf %177, %178 : vector<8x128xf32>
    %180 = math.tanh %174 : vector<8x128xf32>
    %181 = vector.extract_strided_slice %179 {offsets = [0, 0], sizes = [8, 32], strides = [1, 1]} : vector<8x128xf32> to vector<8x32xf32>
    %182 = vector.extract_strided_slice %179 {offsets = [0, 32], sizes = [8, 32], strides = [1, 1]} : vector<8x128xf32> to vector<8x32xf32>
    %183 = vector.extract_strided_slice %180 {offsets = [0, 64], sizes = [8, 32], strides = [1, 1]} : vector<8x128xf32> to vector<8x32xf32>
    %184 = vector.extract_strided_slice %179 {offsets = [0, 96], sizes = [8, 32], strides = [1, 1]} : vector<8x128xf32> to vector<8x32xf32>
    %185 = arith.mulf %182, %161 : vector<8x32xf32>
    %186 = arith.mulf %181, %183 : vector<8x32xf32>
    %187 = arith.addf %185, %186 : vector<8x32xf32>
    %188 = math.tanh %187 : vector<8x32xf32>
    %189 = arith.mulf %184, %188 : vector<8x32xf32>
    %190 = vector.broadcast %c6_i32 : i32 to vector<8x1xi32>
    %191 = arith.cmpi eq, %11, %190 : vector<8x1xi32>
    %192 = vector.shape_cast %191 : vector<8x1xi1> to vector<8x1xi1>
    %193 = vector.broadcast %192 : vector<8x1xi1> to vector<8x32xi1>
    %194 = arith.select %193, %189, %168 : vector<8x32xi1>, vector<8x32xf32>
    %c7_i32 = arith.constant 7 : i32
    %c8_i32_41 = arith.constant 8 : i32
    %195 = arith.muli %c7_i32, %c8_i32_41 : i32
    %196 = tpu.assume_multiple %195, 8 : i32
    %197 = arith.index_cast %196 : i32 to index
    %c0_42 = arith.constant 0 : index
    %198 = vector.load %arg9[%197, %c0_42] : memref<64x128xf32, #tpu.memory_space<vmem>>, vector<8x128xf32>
    %cst_43 = arith.constant dense<0.000000e+00> : vector<8x128xf32>
    %199 = tpu.matmul %189, %8, %cst_43 {dimension_numbers = #tpu.dot_dimension_numbers<[1], [0], [0], [1], [0, 0, 1, 1], [], []>} : vector<8x32xf32>, vector<32x128xf32>, vector<8x128xf32> -> vector<8x128xf32>
    %200 = arith.addf %198, %199 : vector<8x128xf32>
    %201 = arith.negf %200 : vector<8x128xf32>
    %202 = math.exp %201 : vector<8x128xf32>
    %cst_44 = arith.constant 1.000000e+00 : f32
    %203 = vector.broadcast %cst_44 : f32 to vector<8x128xf32>
    %204 = arith.addf %203, %202 : vector<8x128xf32>
    %205 = arith.divf %203, %204 : vector<8x128xf32>
    %206 = math.tanh %200 : vector<8x128xf32>
    %207 = vector.extract_strided_slice %205 {offsets = [0, 0], sizes = [8, 32], strides = [1, 1]} : vector<8x128xf32> to vector<8x32xf32>
    %208 = vector.extract_strided_slice %205 {offsets = [0, 32], sizes = [8, 32], strides = [1, 1]} : vector<8x128xf32> to vector<8x32xf32>
    %209 = vector.extract_strided_slice %206 {offsets = [0, 64], sizes = [8, 32], strides = [1, 1]} : vector<8x128xf32> to vector<8x32xf32>
    %210 = vector.extract_strided_slice %205 {offsets = [0, 96], sizes = [8, 32], strides = [1, 1]} : vector<8x128xf32> to vector<8x32xf32>
    %211 = arith.mulf %208, %187 : vector<8x32xf32>
    %212 = arith.mulf %207, %209 : vector<8x32xf32>
    %213 = arith.addf %211, %212 : vector<8x32xf32>
    %214 = math.tanh %213 : vector<8x32xf32>
    %215 = arith.mulf %210, %214 : vector<8x32xf32>
    %216 = vector.broadcast %c7_i32 : i32 to vector<8x1xi32>
    %217 = arith.cmpi eq, %11, %216 : vector<8x1xi32>
    %218 = vector.shape_cast %217 : vector<8x1xi1> to vector<8x1xi1>
    %219 = vector.broadcast %218 : vector<8x1xi1> to vector<8x32xi1>
    %220 = arith.select %219, %215, %194 : vector<8x32xi1>, vector<8x32xf32>
    %c8_i32_45 = arith.constant 8 : i32
    %c0_46 = arith.constant 0 : index
    %c0_47 = arith.constant 0 : index
    %221 = vector.load %arg6[%c0_46, %c0_47] : memref<32x1xf32, #tpu.memory_space<vmem>>, vector<32x1xf32>
    %cst_48 = arith.constant dense<0.000000e+00> : vector<8x1xf32>
    %222 = tpu.matmul %220, %221, %cst_48 {dimension_numbers = #tpu.dot_dimension_numbers<[1], [0], [0], [1], [0, 0, 1, 1], [], []>} : vector<8x32xf32>, vector<32x1xf32>, vector<8x1xf32> -> vector<8x1xf32>
    %c0_49 = arith.constant 0 : index
    %c0_50 = arith.constant 0 : index
    %223 = vector.load %arg7[%c0_49, %c0_50] : memref<1x1xf32, #tpu.memory_space<vmem>>, vector<1x1xf32>
    %224 = vector.broadcast %223 : vector<1x1xf32> to vector<8x1xf32>
    %225 = arith.addf %222, %224 : vector<8x1xf32>
    %c0_51 = arith.constant 0 : index
    %c0_52 = arith.constant 0 : index
    %226 = vector.load %arg8[%c0_51, %c0_52] : memref<8x1xf32, #tpu.memory_space<vmem>>, vector<8x1xf32>
    tpu.vector_store %arg8[%c0_51, %c0_52], %225 {strides = array<i32>} : memref<8x1xf32, #tpu.memory_space<vmem>>, vector<8x1xf32>,
    return
  }
  func.func @transform_0(%arg0: i32) -> (i32, i32) {
    %c0_i32 = arith.constant 0 : i32
    %c0_i32_0 = arith.constant 0 : i32
    return %arg0, %c0_i32 : i32, i32
  }
  func.func @transform_1(%arg0: i32) -> (i32, i32, i32) {
    %c0_i32 = arith.constant 0 : i32
    %c0_i32_0 = arith.constant 0 : i32
    %c0_i32_1 = arith.constant 0 : i32
    return %c0_i32, %arg0, %c0_i32_0 : i32, i32, i32
  }
  func.func @transform_2(%arg0: i32) -> (i32, i32) {
    %c0_i32 = arith.constant 0 : i32
    %c0_i32_0 = arith.constant 0 : i32
    %c0_i32_1 = arith.constant 0 : i32
    return %c0_i32, %c0_i32_0 : i32, i32
  }
  func.func @transform_3(%arg0: i32) -> (i32, i32) {
    %c0_i32 = arith.constant 0 : i32
    %c0_i32_0 = arith.constant 0 : i32
    %c0_i32_1 = arith.constant 0 : i32
    return %c0_i32, %c0_i32_0 : i32, i32
  }
  func.func @transform_4(%arg0: i32) -> (i32, i32) {
    %c0_i32 = arith.constant 0 : i32
    %c0_i32_0 = arith.constant 0 : i32
    %c0_i32_1 = arith.constant 0 : i32
    return %c0_i32, %c0_i32_0 : i32, i32
  }
  func.func @transform_5(%arg0: i32) -> (i32, i32) {
    %c0_i32 = arith.constant 0 : i32
    %c0_i32_0 = arith.constant 0 : i32
    %c0_i32_1 = arith.constant 0 : i32
    return %c0_i32, %c0_i32_0 : i32, i32
  }
  func.func @transform_6(%arg0: i32) -> (i32, i32) {
    %c0_i32 = arith.constant 0 : i32
    %c0_i32_0 = arith.constant 0 : i32
    %c0_i32_1 = arith.constant 0 : i32
    return %c0_i32, %c0_i32_0 : i32, i32
  }
  func.func @transform_7(%arg0: i32) -> (i32, i32) {
    %c0_i32 = arith.constant 0 : i32
    %c0_i32_0 = arith.constant 0 : i32
    return %arg0, %c0_i32 : i32, i32
  }
}

</mosaic_0001>

<llo_original>
// kernel: custom_lstm_forward.1
$region0: #{custom_lstm_forward.1}
  #allocation0 [shape = 'u32[]', space=smem, size = 0x4, offset = 0x4, fixed_abs, tag = 'smem constant byte address 0x4 - core index']
  #allocation1 [shape = 'u32[72,128]{1,0:T(1,128)}', space=vmem, size = 0x9000, scoped, tag = 'internal scratch']
  #allocation2 [shape = 'f32[64,128]{1,0:T(8,128)}', space=vmem, size = 0x8000, scoped, tag = 'scratch operand']
  #allocation3 [shape = 'f32[1,1]{1,0:T(1,128)S(1)}', space=vmem, size = 0x200, scoped, tag = 'scoped memory for custom_lstm_forward.1']
  %s0 = inlined_call_operand.vmem [shape: s32[8,1], index: 0, kind: input, shape index: {}]
  %s1 = inlined_call_operand.vmem [shape: f32[8,8,32], index: 1, kind: input, shape index: {}]
  %s2 = inlined_call_operand.vmem [shape: f32[32,128], index: 2, kind: input, shape index: {}]
  %s3 = inlined_call_operand.vmem [shape: f32[32,128], index: 3, kind: input, shape index: {}]
  %s4 = inlined_call_operand.vmem [shape: f32[1,128], index: 4, kind: input, shape index: {}]
  %s5 = inlined_call_operand.vmem [shape: f32[32,1], index: 5, kind: input, shape index: {}]
  %s6 = inlined_call_operand.<no memory space> [shape: f32[1,1], index: 6, kind: input, shape index: {}]
  %s7 = inlined_call_operand.vmem [shape: f32[8,1], index: 7, kind: output, shape index: {}]
  %s8 = sld [smem:[#allocation0]]
  $region38: #{custom_lstm_forward.1} parent=0
    _
  %s10 = ssub.s32 1, %s8
  %s11 = scalar_select 0, %s10, %s8
  %v12 = vstv %s6
  %13 = vst [vmem:[#allocation3] sm:$0x1] %v12
  // Predicated region
  $region2: #{custom_lstm_forward.1} parent=0 // pred_check
    _
  $region3: #{custom_lstm_forward.1} parent=0 // pred_check_branch
    %15 = sbr.rel (0) target = $region5
  $region4: #{custom_lstm_forward.1} parent=0 // pred_region
    _
  $region5: #{custom_lstm_forward.1} parent=0 // pred_fallthru
    _
  // Predicated region
  $region6: #{custom_lstm_forward.1} parent=0 // pred_check
    _
  $region7: #{custom_lstm_forward.1} parent=0 // pred_check_branch
    %17 = sbr.rel (0) target = $region9
  $region8: #{custom_lstm_forward.1} parent=0 // pred_region
    _
  $region9: #{custom_lstm_forward.1} parent=0 // pred_fallthru
    _
  // Predicated region
  $region10: #{custom_lstm_forward.1} parent=0 // pred_check
    _
  $region11: #{custom_lstm_forward.1} parent=0 // pred_check_branch
    %19 = sbr.rel (0) target = $region13
  $region12: #{custom_lstm_forward.1} parent=0 // pred_region
    _
  $region13: #{custom_lstm_forward.1} parent=0 // pred_fallthru
    _
  // Predicated region
  $region14: #{custom_lstm_forward.1} parent=0 // pred_check
    _
  $region15: #{custom_lstm_forward.1} parent=0 // pred_check_branch
    %21 = sbr.rel (0) target = $region17
  $region16: #{custom_lstm_forward.1} parent=0 // pred_region
    _
  $region17: #{custom_lstm_forward.1} parent=0 // pred_fallthru
    _
  // Predicated region
  $region18: #{custom_lstm_forward.1} parent=0 // pred_check
    _
  $region19: #{custom_lstm_forward.1} parent=0 // pred_check_branch
    %23 = sbr.rel (0) target = $region21
  $region20: #{custom_lstm_forward.1} parent=0 // pred_region
    _
  $region21: #{custom_lstm_forward.1} parent=0 // pred_fallthru
    _
  // Predicated region
  $region22: #{custom_lstm_forward.1} parent=0 // pred_check
    _
  $region23: #{custom_lstm_forward.1} parent=0 // pred_check_branch
    %25 = sbr.rel (0) target = $region25
  $region24: #{custom_lstm_forward.1} parent=0 // pred_region
    _
  $region25: #{custom_lstm_forward.1} parent=0 // pred_fallthru
    _
  // Predicated region
  $region26: #{custom_lstm_forward.1} parent=0 // pred_check
    _
  $region27: #{custom_lstm_forward.1} parent=0 // pred_check_branch
    %27 = sbr.rel (0) target = $region29
  $region28: #{custom_lstm_forward.1} parent=0 // pred_region
    _
  $region29: #{custom_lstm_forward.1} parent=0 // pred_fallthru
    _
  %v28 = vld [vmem:[%s1] sm:$0xff]
  %v29 = vld [vmem:[%s1 + $0x8] sm:$0xff]
  %v30 = vld [vmem:[%s1 + $0x10] sm:$0xff]
  %v31 = vld [vmem:[%s1 + $0x18] sm:$0xff]
  %v32 = vld [vmem:[%s1 + $0x20] sm:$0xff]
  %v33 = vld [vmem:[%s1 + $0x28] sm:$0xff]
  %v34 = vld [vmem:[%s1 + $0x30] sm:$0xff]
  %v35 = vld [vmem:[%s1 + $0x38] sm:$0xff]
  %v36 = vld [vmem:[%s2] sm:$0xff]
  %v37 = vld [vmem:[%s2 + $0x8] sm:$0xff]
  %v38 = vld [vmem:[%s2 + $0x10] sm:$0xff]
  %v39 = vld [vmem:[%s2 + $0x18] sm:$0xff]
  %v40 = vld [vmem:[%s4] sm:$0x1]
  %v42 = vperm.slane %v40, 0
  %vm44 = vcmask 261120
  %v46 = vsel %vm44, %v28, 0
  %v49 = vsel %vm44, %v29, 0
  %v52 = vsel %vm44, %v30, 0
  %v55 = vsel %vm44, %v31, 0
  %v58 = vsel %vm44, %v32, 0
  %v61 = vsel %vm44, %v33, 0
  %v64 = vsel %vm44, %v34, 0
  %v67 = vsel %vm44, %v35, 0
  %69 = vmatpush.msra.mxu0 0.0
  %70 = vmatpush.msra.mxu0 0.0
  %71 = vmatpush.msra.mxu0 0.0
  %72 = vmatpush.msra.mxu0 0.0
  %73 = vmatpush.msra.mxu0 0.0
  %74 = vmatpush.msra.mxu0 0.0
  %75 = vmatpush.msra.mxu0 0.0
  %76 = vmatpush.msra.mxu0 0.0
  %77 = vmatpush.msra.mxu0 0.0
  %78 = vmatpush.msra.mxu0 0.0
  %79 = vmatpush.msra.mxu0 0.0
  %80 = vmatpush.msra.mxu0 0.0
  %81 = vmatpush.msra.mxu0 %v39
  %82 = vmatpush.msra.mxu0 %v38
  %83 = vmatpush.msra.mxu0 %v37
  %84 = vmatpush.msra.mxu0 %v36
  %85 = vmatmul.f32.gmra.mxu0 %v46
  %v86 = vpop.f32.mrf.mxu0
  %v87 = vadd.f32 %v42, %v86
  %88 = vmatmul.f32.gmra.mxu0 %v49
  %v89 = vpop.f32.mrf.mxu0
  %v90 = vadd.f32 %v42, %v89
  %91 = vmatmul.f32.gmra.mxu0 %v52
  %v92 = vpop.f32.mrf.mxu0
  %v93 = vadd.f32 %v42, %v92
  %94 = vmatmul.f32.gmra.mxu0 %v55
  %v95 = vpop.f32.mrf.mxu0
  %v96 = vadd.f32 %v42, %v95
  %97 = vmatmul.f32.gmra.mxu0 %v58
  %v98 = vpop.f32.mrf.mxu0
  %v99 = vadd.f32 %v42, %v98
  %100 = vmatmul.f32.gmra.mxu0 %v61
  %v101 = vpop.f32.mrf.mxu0
  %v102 = vadd.f32 %v42, %v101
  %103 = vmatmul.f32.gmra.mxu0 %v64
  %v104 = vpop.f32.mrf.mxu0
  %v105 = vadd.f32 %v42, %v104
  %106 = vmatmul.f32.gmra.mxu0 %v67
  %v107 = vpop.f32.mrf.mxu0
  %v108 = vadd.f32 %v42, %v107
  %109 = vdwg.mxu0
  %110 = vst [vmem:[#allocation2] sm:$0xff] %v87
  %111 = vst [vmem:[#allocation2 + $0x8] sm:$0xff] %v90
  %112 = vst [vmem:[#allocation2 + $0x10] sm:$0xff] %v93
  %113 = vst [vmem:[#allocation2 + $0x18] sm:$0xff] %v96
  %114 = vst [vmem:[#allocation2 + $0x20] sm:$0xff] %v99
  %115 = vst [vmem:[#allocation2 + $0x28] sm:$0xff] %v102
  %116 = vst [vmem:[#allocation2 + $0x30] sm:$0xff] %v105
  %117 = vst [vmem:[#allocation2 + $0x38] sm:$0xff] %v108
  %v118 = vld [vmem:[%s3] sm:$0xff]
  %v119 = vld [vmem:[%s3 + $0x8] sm:$0xff]
  %v120 = vld [vmem:[%s3 + $0x10] sm:$0xff]
  %v121 = vld [vmem:[%s3 + $0x18] sm:$0xff]
  %v122 = vld [vmem:[%s0] sm:$0xff]
  %v123 = vsub.s32 %v122, 1
  %v124 = vld [vmem:[#allocation2] sm:$0xff]
  %v126 = vsel %vm44, 0.0, 0
  %128 = vmatpush.msra.mxu0 0.0
  %129 = vmatpush.msra.mxu0 0.0
  %130 = vmatpush.msra.mxu0 0.0
  %131 = vmatpush.msra.mxu0 0.0
  %132 = vmatpush.msra.mxu0 0.0
  %133 = vmatpush.msra.mxu0 0.0
  %134 = vmatpush.msra.mxu0 0.0
  %135 = vmatpush.msra.mxu0 0.0
  %136 = vmatpush.msra.mxu0 0.0
  %137 = vmatpush.msra.mxu0 0.0
  %138 = vmatpush.msra.mxu0 0.0
  %139 = vmatpush.msra.mxu0 0.0
  %140 = vmatpush.msra.mxu0 %v121
  %141 = vmatpush.msra.mxu0 %v120
  %142 = vmatpush.msra.mxu0 %v119
  %143 = vmatpush.msra.mxu0 %v118
  %144 = vmatmul.f32.gmra.mxu0 %v126
  %v145 = vpop.f32.mrf.mxu0
  %v146 = vadd.f32 0.0, %v145
  %147 = vdwg.mxu0
  %v148 = vadd.f32 %v124, %v146
  %v149 = vxor.u32 %v148, 2147483648
  %v150 = vmul.f32 %v149, 1.442695
  %v151 = vpow.pop %v150
  %v152 = vadd.f32 %v151, 1.0
  %v153 = vrcp.pop %v152
  %v154 = vmul.f32 %v152, %v153
  %v155 = vsub.f32 1.0, %v154
  %v156 = vmul.f32 %v153, %v155
  %v157 = vadd.f32 %v153, %v156
  %vm158 = vweird.f32 %v152
  %vm159 = vweird.f32 %v153
  %vm160 = vmor %vm158, %vm159
  %v161 = vsel %vm160, %v153, %v157
  %v162 = vand.u32 2147483647, %v152
  %vm163 = vcmp.eq.f32.partialorder %v162, 8.507059e+37
  %v164 = vand.u32 %v152, 2147483648
  %v165 = vor.u32 1.1754944e-38, %v164
  %v166 = vsel %vm163, %v165, %v161
  %v167 = vmul.f32 1.0, %v166
  %v168 = vtanh.pop %v148
  %v169 = vmul.f32 %v167, 0.0
  %171 = vrot.lane.b32.xlu0 %v168, 64
  %v172 = vpop.permute.xlu0 %171
  %v174 = vmul.f32 %v167, %v172
  %176 = vrot.lane.b32.xlu0 %v174, 32
  %v177 = vpop.permute.xlu0 %176
  %v179 = vadd.f32 %v169, %v177
  %v180 = vtanh.pop %v179
  %182 = vrot.lane.b32.xlu0 %v180, 64
  %v183 = vpop.permute.xlu0 %182
  %v185 = vmul.f32 %v167, %v183
  %vm186 = vcmp.eq.s32.totalorder %v123, 0
  %v187 = vsel %vm186, 1, 0
  %188 = vset.pattern.permute.xlu0 0
  %189 = vperm.xlu0 %188, %v187
  %v190 = vpop.permute.xlu0 %189
  %vm191 = vcmp.eq.s32.totalorder %v190, 1
  %v192 = vsel %vm191, %v185, 0.0
  %s193 = scalar_lea.vmem [#allocation2], 8
  %v194 = vld [vmem:[%s193] sm:$0xff]
  %196 = vrot.lane.b32.xlu0 %v185, 32
  %v197 = vpop.permute.xlu0 %196
  %v198 = vsel %vm44, %v197, 0
  %200 = vmatpush.msra.mxu0 0.0
  %201 = vmatpush.msra.mxu0 0.0
  %202 = vmatpush.msra.mxu0 0.0
  %203 = vmatpush.msra.mxu0 0.0
  %204 = vmatpush.msra.mxu0 0.0
  %205 = vmatpush.msra.mxu0 0.0
  %206 = vmatpush.msra.mxu0 0.0
  %207 = vmatpush.msra.mxu0 0.0
  %208 = vmatpush.msra.mxu0 0.0
  %209 = vmatpush.msra.mxu0 0.0
  %210 = vmatpush.msra.mxu0 0.0
  %211 = vmatpush.msra.mxu0 0.0
  %212 = vmatpush.msra.mxu0 %v121
  %213 = vmatpush.msra.mxu0 %v120
  %214 = vmatpush.msra.mxu0 %v119
  %215 = vmatpush.msra.mxu0 %v118
  %216 = vmatmul.f32.gmra.mxu0 %v198
  %v217 = vpop.f32.mrf.mxu0
  %v218 = vadd.f32 0.0, %v217
  %219 = vdwg.mxu0
  %v220 = vadd.f32 %v194, %v218
  %v221 = vxor.u32 %v220, 2147483648
  %v222 = vmul.f32 %v221, 1.442695
  %v223 = vpow.pop %v222
  %v224 = vadd.f32 %v223, 1.0
  %v225 = vrcp.pop %v224
  %v226 = vmul.f32 %v224, %v225
  %v227 = vsub.f32 1.0, %v226
  %v228 = vmul.f32 %v225, %v227
  %v229 = vadd.f32 %v225, %v228
  %vm230 = vweird.f32 %v224
  %vm231 = vweird.f32 %v225
  %vm232 = vmor %vm230, %vm231
  %v233 = vsel %vm232, %v225, %v229
  %v234 = vand.u32 2147483647, %v224
  %vm235 = vcmp.eq.f32.partialorder %v234, 8.507059e+37
  %v236 = vand.u32 %v224, 2147483648
  %v237 = vor.u32 1.1754944e-38, %v236
  %v238 = vsel %vm235, %v237, %v233
  %v239 = vmul.f32 1.0, %v238
  %v240 = vtanh.pop %v220
  %v241 = vmul.f32 %v239, %v179
  %243 = vrot.lane.b32.xlu0 %v240, 64
  %v244 = vpop.permute.xlu0 %243
  %v246 = vmul.f32 %v239, %v244
  %248 = vrot.lane.b32.xlu0 %v246, 32
  %v249 = vpop.permute.xlu0 %248
  %v251 = vadd.f32 %v241, %v249
  %v252 = vtanh.pop %v251
  %254 = vrot.lane.b32.xlu0 %v252, 64
  %v255 = vpop.permute.xlu0 %254
  %v257 = vmul.f32 %v239, %v255
  %vm258 = vcmp.eq.s32.totalorder %v123, 1
  %v259 = vsel %vm258, 1, 0
  %260 = vset.pattern.permute.xlu0 0
  %261 = vperm.xlu0 %260, %v259
  %v262 = vpop.permute.xlu0 %261
  %vm263 = vcmp.eq.s32.totalorder %v262, 1
  %v264 = vsel %vm263, %v257, %v192
  %s265 = scalar_lea.vmem [#allocation2], 16
  %v266 = vld [vmem:[%s265] sm:$0xff]
  %268 = vrot.lane.b32.xlu0 %v257, 32
  %v269 = vpop.permute.xlu0 %268
  %v270 = vsel %vm44, %v269, 0
  %272 = vmatpush.msra.mxu0 0.0
  %273 = vmatpush.msra.mxu0 0.0
  %274 = vmatpush.msra.mxu0 0.0
  %275 = vmatpush.msra.mxu0 0.0
  %276 = vmatpush.msra.mxu0 0.0
  %277 = vmatpush.msra.mxu0 0.0
  %278 = vmatpush.msra.mxu0 0.0
  %279 = vmatpush.msra.mxu0 0.0
  %280 = vmatpush.msra.mxu0 0.0
  %281 = vmatpush.msra.mxu0 0.0
  %282 = vmatpush.msra.mxu0 0.0
  %283 = vmatpush.msra.mxu0 0.0
  %284 = vmatpush.msra.mxu0 %v121
  %285 = vmatpush.msra.mxu0 %v120
  %286 = vmatpush.msra.mxu0 %v119
  %287 = vmatpush.msra.mxu0 %v118
  %288 = vmatmul.f32.gmra.mxu0 %v270
  %v289 = vpop.f32.mrf.mxu0
  %v290 = vadd.f32 0.0, %v289
  %291 = vdwg.mxu0
  %v292 = vadd.f32 %v266, %v290
  %v293 = vxor.u32 %v292, 2147483648
  %v294 = vmul.f32 %v293, 1.442695
  %v295 = vpow.pop %v294
  %v296 = vadd.f32 %v295, 1.0
  %v297 = vrcp.pop %v296
  %v298 = vmul.f32 %v296, %v297
  %v299 = vsub.f32 1.0, %v298
  %v300 = vmul.f32 %v297, %v299
  %v301 = vadd.f32 %v297, %v300
  %vm302 = vweird.f32 %v296
  %vm303 = vweird.f32 %v297
  %vm304 = vmor %vm302, %vm303
  %v305 = vsel %vm304, %v297, %v301
  %v306 = vand.u32 2147483647, %v296
  %vm307 = vcmp.eq.f32.partialorder %v306, 8.507059e+37
  %v308 = vand.u32 %v296, 2147483648
  %v309 = vor.u32 1.1754944e-38, %v308
  %v310 = vsel %vm307, %v309, %v305
  %v311 = vmul.f32 1.0, %v310
  %v312 = vtanh.pop %v292
  %v313 = vmul.f32 %v311, %v251
  %315 = vrot.lane.b32.xlu0 %v312, 64
  %v316 = vpop.permute.xlu0 %315
  %v318 = vmul.f32 %v311, %v316
  %320 = vrot.lane.b32.xlu0 %v318, 32
  %v321 = vpop.permute.xlu0 %320
  %v323 = vadd.f32 %v313, %v321
  %v324 = vtanh.pop %v323
  %326 = vrot.lane.b32.xlu0 %v324, 64
  %v327 = vpop.permute.xlu0 %326
  %v329 = vmul.f32 %v311, %v327
  %vm330 = vcmp.eq.s32.totalorder %v123, 2
  %v331 = vsel %vm330, 1, 0
  %332 = vset.pattern.permute.xlu0 0
  %333 = vperm.xlu0 %332, %v331
  %v334 = vpop.permute.xlu0 %333
  %vm335 = vcmp.eq.s32.totalorder %v334, 1
  %v336 = vsel %vm335, %v329, %v264
  %s337 = scalar_lea.vmem [#allocation2], 24
  %v338 = vld [vmem:[%s337] sm:$0xff]
  %340 = vrot.lane.b32.xlu0 %v329, 32
  %v341 = vpop.permute.xlu0 %340
  %v342 = vsel %vm44, %v341, 0
  %344 = vmatpush.msra.mxu0 0.0
  %345 = vmatpush.msra.mxu0 0.0
  %346 = vmatpush.msra.mxu0 0.0
  %347 = vmatpush.msra.mxu0 0.0
  %348 = vmatpush.msra.mxu0 0.0
  %349 = vmatpush.msra.mxu0 0.0
  %350 = vmatpush.msra.mxu0 0.0
  %351 = vmatpush.msra.mxu0 0.0
  %352 = vmatpush.msra.mxu0 0.0
  %353 = vmatpush.msra.mxu0 0.0
  %354 = vmatpush.msra.mxu0 0.0
  %355 = vmatpush.msra.mxu0 0.0
  %356 = vmatpush.msra.mxu0 %v121
  %357 = vmatpush.msra.mxu0 %v120
  %358 = vmatpush.msra.mxu0 %v119
  %359 = vmatpush.msra.mxu0 %v118
  %360 = vmatmul.f32.gmra.mxu0 %v342
  %v361 = vpop.f32.mrf.mxu0
  %v362 = vadd.f32 0.0, %v361
  %363 = vdwg.mxu0
  %v364 = vadd.f32 %v338, %v362
  %v365 = vxor.u32 %v364, 2147483648
  %v366 = vmul.f32 %v365, 1.442695
  %v367 = vpow.pop %v366
  %v368 = vadd.f32 %v367, 1.0
  %v369 = vrcp.pop %v368
  %v370 = vmul.f32 %v368, %v369
  %v371 = vsub.f32 1.0, %v370
  %v372 = vmul.f32 %v369, %v371
  %v373 = vadd.f32 %v369, %v372
  %vm374 = vweird.f32 %v368
  %vm375 = vweird.f32 %v369
  %vm376 = vmor %vm374, %vm375
  %v377 = vsel %vm376, %v369, %v373
  %v378 = vand.u32 2147483647, %v368
  %vm379 = vcmp.eq.f32.partialorder %v378, 8.507059e+37
  %v380 = vand.u32 %v368, 2147483648
  %v381 = vor.u32 1.1754944e-38, %v380
  %v382 = vsel %vm379, %v381, %v377
  %v383 = vmul.f32 1.0, %v382
  %v384 = vtanh.pop %v364
  %v385 = vmul.f32 %v383, %v323
  %387 = vrot.lane.b32.xlu0 %v384, 64
  %v388 = vpop.permute.xlu0 %387
  %v390 = vmul.f32 %v383, %v388
  %392 = vrot.lane.b32.xlu0 %v390, 32
  %v393 = vpop.permute.xlu0 %392
  %v395 = vadd.f32 %v385, %v393
  %v396 = vtanh.pop %v395
  %398 = vrot.lane.b32.xlu0 %v396, 64
  %v399 = vpop.permute.xlu0 %398
  %v401 = vmul.f32 %v383, %v399
  %vm402 = vcmp.eq.s32.totalorder %v123, 3
  %v403 = vsel %vm402, 1, 0
  %404 = vset.pattern.permute.xlu0 0
  %405 = vperm.xlu0 %404, %v403
  %v406 = vpop.permute.xlu0 %405
  %vm407 = vcmp.eq.s32.totalorder %v406, 1
  %v408 = vsel %vm407, %v401, %v336
  %s409 = scalar_lea.vmem [#allocation2], 32
  %v410 = vld [vmem:[%s409] sm:$0xff]
  %412 = vrot.lane.b32.xlu0 %v401, 32
  %v413 = vpop.permute.xlu0 %412
  %v414 = vsel %vm44, %v413, 0
  %416 = vmatpush.msra.mxu0 0.0
  %417 = vmatpush.msra.mxu0 0.0
  %418 = vmatpush.msra.mxu0 0.0
  %419 = vmatpush.msra.mxu0 0.0
  %420 = vmatpush.msra.mxu0 0.0
  %421 = vmatpush.msra.mxu0 0.0
  %422 = vmatpush.msra.mxu0 0.0
  %423 = vmatpush.msra.mxu0 0.0
  %424 = vmatpush.msra.mxu0 0.0
  %425 = vmatpush.msra.mxu0 0.0
  %426 = vmatpush.msra.mxu0 0.0
  %427 = vmatpush.msra.mxu0 0.0
  %428 = vmatpush.msra.mxu0 %v121
  %429 = vmatpush.msra.mxu0 %v120
  %430 = vmatpush.msra.mxu0 %v119
  %431 = vmatpush.msra.mxu0 %v118
  %432 = vmatmul.f32.gmra.mxu0 %v414
  %v433 = vpop.f32.mrf.mxu0
  %v434 = vadd.f32 0.0, %v433
  %435 = vdwg.mxu0
  %v436 = vadd.f32 %v410, %v434
  %v437 = vxor.u32 %v436, 2147483648
  %v438 = vmul.f32 %v437, 1.442695
  %v439 = vpow.pop %v438
  %v440 = vadd.f32 %v439, 1.0
  %v441 = vrcp.pop %v440
  %v442 = vmul.f32 %v440, %v441
  %v443 = vsub.f32 1.0, %v442
  %v444 = vmul.f32 %v441, %v443
  %v445 = vadd.f32 %v441, %v444
  %vm446 = vweird.f32 %v440
  %vm447 = vweird.f32 %v441
  %vm448 = vmor %vm446, %vm447
  %v449 = vsel %vm448, %v441, %v445
  %v450 = vand.u32 2147483647, %v440
  %vm451 = vcmp.eq.f32.partialorder %v450, 8.507059e+37
  %v452 = vand.u32 %v440, 2147483648
  %v453 = vor.u32 1.1754944e-38, %v452
  %v454 = vsel %vm451, %v453, %v449
  %v455 = vmul.f32 1.0, %v454
  %v456 = vtanh.pop %v436
  %v457 = vmul.f32 %v455, %v395
  %459 = vrot.lane.b32.xlu0 %v456, 64
  %v460 = vpop.permute.xlu0 %459
  %v462 = vmul.f32 %v455, %v460
  %464 = vrot.lane.b32.xlu0 %v462, 32
  %v465 = vpop.permute.xlu0 %464
  %v467 = vadd.f32 %v457, %v465
  %v468 = vtanh.pop %v467
  %470 = vrot.lane.b32.xlu0 %v468, 64
  %v471 = vpop.permute.xlu0 %470
  %v473 = vmul.f32 %v455, %v471
  %vm474 = vcmp.eq.s32.totalorder %v123, 4
  %v475 = vsel %vm474, 1, 0
  %476 = vset.pattern.permute.xlu0 0
  %477 = vperm.xlu0 %476, %v475
  %v478 = vpop.permute.xlu0 %477
  %vm479 = vcmp.eq.s32.totalorder %v478, 1
  %v480 = vsel %vm479, %v473, %v408
  %s481 = scalar_lea.vmem [#allocation2], 40
  %v482 = vld [vmem:[%s481] sm:$0xff]
  %484 = vrot.lane.b32.xlu0 %v473, 32
  %v485 = vpop.permute.xlu0 %484
  %v486 = vsel %vm44, %v485, 0
  %488 = vmatpush.msra.mxu0 0.0
  %489 = vmatpush.msra.mxu0 0.0
  %490 = vmatpush.msra.mxu0 0.0
  %491 = vmatpush.msra.mxu0 0.0
  %492 = vmatpush.msra.mxu0 0.0
  %493 = vmatpush.msra.mxu0 0.0
  %494 = vmatpush.msra.mxu0 0.0
  %495 = vmatpush.msra.mxu0 0.0
  %496 = vmatpush.msra.mxu0 0.0
  %497 = vmatpush.msra.mxu0 0.0
  %498 = vmatpush.msra.mxu0 0.0
  %499 = vmatpush.msra.mxu0 0.0
  %500 = vmatpush.msra.mxu0 %v121
  %501 = vmatpush.msra.mxu0 %v120
  %502 = vmatpush.msra.mxu0 %v119
  %503 = vmatpush.msra.mxu0 %v118
  %504 = vmatmul.f32.gmra.mxu0 %v486
  %v505 = vpop.f32.mrf.mxu0
  %v506 = vadd.f32 0.0, %v505
  %507 = vdwg.mxu0
  %v508 = vadd.f32 %v482, %v506
  %v509 = vxor.u32 %v508, 2147483648
  %v510 = vmul.f32 %v509, 1.442695
  %v511 = vpow.pop %v510
  %v512 = vadd.f32 %v511, 1.0
  %v513 = vrcp.pop %v512
  %v514 = vmul.f32 %v512, %v513
  %v515 = vsub.f32 1.0, %v514
  %v516 = vmul.f32 %v513, %v515
  %v517 = vadd.f32 %v513, %v516
  %vm518 = vweird.f32 %v512
  %vm519 = vweird.f32 %v513
  %vm520 = vmor %vm518, %vm519
  %v521 = vsel %vm520, %v513, %v517
  %v522 = vand.u32 2147483647, %v512
  %vm523 = vcmp.eq.f32.partialorder %v522, 8.507059e+37
  %v524 = vand.u32 %v512, 2147483648
  %v525 = vor.u32 1.1754944e-38, %v524
  %v526 = vsel %vm523, %v525, %v521
  %v527 = vmul.f32 1.0, %v526
  %v528 = vtanh.pop %v508
  %v529 = vmul.f32 %v527, %v467
  %531 = vrot.lane.b32.xlu0 %v528, 64
  %v532 = vpop.permute.xlu0 %531
  %v534 = vmul.f32 %v527, %v532
  %536 = vrot.lane.b32.xlu0 %v534, 32
  %v537 = vpop.permute.xlu0 %536
  %v539 = vadd.f32 %v529, %v537
  %v540 = vtanh.pop %v539
  %542 = vrot.lane.b32.xlu0 %v540, 64
  %v543 = vpop.permute.xlu0 %542
  %v545 = vmul.f32 %v527, %v543
  %vm546 = vcmp.eq.s32.totalorder %v123, 5
  %v547 = vsel %vm546, 1, 0
  %548 = vset.pattern.permute.xlu0 0
  %549 = vperm.xlu0 %548, %v547
  %v550 = vpop.permute.xlu0 %549
  %vm551 = vcmp.eq.s32.totalorder %v550, 1
  %v552 = vsel %vm551, %v545, %v480
  %s553 = scalar_lea.vmem [#allocation2], 48
  %v554 = vld [vmem:[%s553] sm:$0xff]
  %556 = vrot.lane.b32.xlu0 %v545, 32
  %v557 = vpop.permute.xlu0 %556
  %v558 = vsel %vm44, %v557, 0
  %560 = vmatpush.msra.mxu0 0.0
  %561 = vmatpush.msra.mxu0 0.0
  %562 = vmatpush.msra.mxu0 0.0
  %563 = vmatpush.msra.mxu0 0.0
  %564 = vmatpush.msra.mxu0 0.0
  %565 = vmatpush.msra.mxu0 0.0
  %566 = vmatpush.msra.mxu0 0.0
  %567 = vmatpush.msra.mxu0 0.0
  %568 = vmatpush.msra.mxu0 0.0
  %569 = vmatpush.msra.mxu0 0.0
  %570 = vmatpush.msra.mxu0 0.0
  %571 = vmatpush.msra.mxu0 0.0
  %572 = vmatpush.msra.mxu0 %v121
  %573 = vmatpush.msra.mxu0 %v120
  %574 = vmatpush.msra.mxu0 %v119
  %575 = vmatpush.msra.mxu0 %v118
  %576 = vmatmul.f32.gmra.mxu0 %v558
  %v577 = vpop.f32.mrf.mxu0
  %v578 = vadd.f32 0.0, %v577
  %579 = vdwg.mxu0
  %v580 = vadd.f32 %v554, %v578
  %v581 = vxor.u32 %v580, 2147483648
  %v582 = vmul.f32 %v581, 1.442695
  %v583 = vpow.pop %v582
  %v584 = vadd.f32 %v583, 1.0
  %v585 = vrcp.pop %v584
  %v586 = vmul.f32 %v584, %v585
  %v587 = vsub.f32 1.0, %v586
  %v588 = vmul.f32 %v585, %v587
  %v589 = vadd.f32 %v585, %v588
  %vm590 = vweird.f32 %v584
  %vm591 = vweird.f32 %v585
  %vm592 = vmor %vm590, %vm591
  %v593 = vsel %vm592, %v585, %v589
  %v594 = vand.u32 2147483647, %v584
  %vm595 = vcmp.eq.f32.partialorder %v594, 8.507059e+37
  %v596 = vand.u32 %v584, 2147483648
  %v597 = vor.u32 1.1754944e-38, %v596
  %v598 = vsel %vm595, %v597, %v593
  %v599 = vmul.f32 1.0, %v598
  %v600 = vtanh.pop %v580
  %v601 = vmul.f32 %v599, %v539
  %603 = vrot.lane.b32.xlu0 %v600, 64
  %v604 = vpop.permute.xlu0 %603
  %v606 = vmul.f32 %v599, %v604
  %608 = vrot.lane.b32.xlu0 %v606, 32
  %v609 = vpop.permute.xlu0 %608
  %v611 = vadd.f32 %v601, %v609
  %v612 = vtanh.pop %v611
  %614 = vrot.lane.b32.xlu0 %v612, 64
  %v615 = vpop.permute.xlu0 %614
  %v617 = vmul.f32 %v599, %v615
  %vm618 = vcmp.eq.s32.totalorder %v123, 6
  %v619 = vsel %vm618, 1, 0
  %620 = vset.pattern.permute.xlu0 0
  %621 = vperm.xlu0 %620, %v619
  %v622 = vpop.permute.xlu0 %621
  %vm623 = vcmp.eq.s32.totalorder %v622, 1
  %v624 = vsel %vm623, %v617, %v552
  %s625 = scalar_lea.vmem [#allocation2], 56
  %v626 = vld [vmem:[%s625] sm:$0xff]
  %628 = vrot.lane.b32.xlu0 %v617, 32
  %v629 = vpop.permute.xlu0 %628
  %v630 = vsel %vm44, %v629, 0
  %632 = vmatpush.msra.mxu0 0.0
  %633 = vmatpush.msra.mxu0 0.0
  %634 = vmatpush.msra.mxu0 0.0
  %635 = vmatpush.msra.mxu0 0.0
  %636 = vmatpush.msra.mxu0 0.0
  %637 = vmatpush.msra.mxu0 0.0
  %638 = vmatpush.msra.mxu0 0.0
  %639 = vmatpush.msra.mxu0 0.0
  %640 = vmatpush.msra.mxu0 0.0
  %641 = vmatpush.msra.mxu0 0.0
  %642 = vmatpush.msra.mxu0 0.0
  %643 = vmatpush.msra.mxu0 0.0
  %644 = vmatpush.msra.mxu0 %v121
  %645 = vmatpush.msra.mxu0 %v120
  %646 = vmatpush.msra.mxu0 %v119
  %647 = vmatpush.msra.mxu0 %v118
  %648 = vmatmul.f32.gmra.mxu0 %v630
  %v649 = vpop.f32.mrf.mxu0
  %v650 = vadd.f32 0.0, %v649
  %651 = vdwg.mxu0
  %v652 = vadd.f32 %v626, %v650
  %v653 = vxor.u32 %v652, 2147483648
  %v654 = vmul.f32 %v653, 1.442695
  %v655 = vpow.pop %v654
  %v656 = vadd.f32 %v655, 1.0
  %v657 = vrcp.pop %v656
  %v658 = vmul.f32 %v656, %v657
  %v659 = vsub.f32 1.0, %v658
  %v660 = vmul.f32 %v657, %v659
  %v661 = vadd.f32 %v657, %v660
  %vm662 = vweird.f32 %v656
  %vm663 = vweird.f32 %v657
  %vm664 = vmor %vm662, %vm663
  %v665 = vsel %vm664, %v657, %v661
  %v666 = vand.u32 2147483647, %v656
  %vm667 = vcmp.eq.f32.partialorder %v666, 8.507059e+37
  %v668 = vand.u32 %v656, 2147483648
  %v669 = vor.u32 1.1754944e-38, %v668
  %v670 = vsel %vm667, %v669, %v665
  %v671 = vmul.f32 1.0, %v670
  %v672 = vtanh.pop %v652
  %v673 = vmul.f32 %v671, %v611
  %675 = vrot.lane.b32.xlu0 %v672, 64
  %v676 = vpop.permute.xlu0 %675
  %v678 = vmul.f32 %v671, %v676
  %680 = vrot.lane.b32.xlu0 %v678, 32
  %v681 = vpop.permute.xlu0 %680
  %v683 = vadd.f32 %v673, %v681
  %v684 = vtanh.pop %v683
  %686 = vrot.lane.b32.xlu0 %v684, 64
  %v687 = vpop.permute.xlu0 %686
  %v689 = vmul.f32 %v671, %v687
  %vm690 = vcmp.eq.s32.totalorder %v123, 7
  %v691 = vsel %vm690, 1, 0
  %692 = vset.pattern.permute.xlu0 0
  %693 = vperm.xlu0 %692, %v691
  %v694 = vpop.permute.xlu0 %693
  %vm695 = vcmp.eq.s32.totalorder %v694, 1
  %v696 = vsel %vm695, %v689, %v624
  %v697 = vld [vmem:[%s5] sm:$0xff]
  %v698 = vld [vmem:[%s5 + $0x8] sm:$0xff]
  %v699 = vld [vmem:[%s5 + $0x10] sm:$0xff]
  %v700 = vld [vmem:[%s5 + $0x18] sm:$0xff]
  %v701 = vld [vmem:[#allocation3] sm:$0x1]
  %v703 = vperm.slane %v701, 0
  %706 = vrot.lane.b32.xlu0 %v696, 32
  %v707 = vpop.permute.xlu0 %706
  %v708 = vsel %vm44, %v707, 0
  %710 = vmatpush.msra.mxu0 0.0
  %711 = vmatpush.msra.mxu0 0.0
  %712 = vmatpush.msra.mxu0 0.0
  %713 = vmatpush.msra.mxu0 0.0
  %714 = vmatpush.msra.mxu0 0.0
  %715 = vmatpush.msra.mxu0 0.0
  %716 = vmatpush.msra.mxu0 0.0
  %717 = vmatpush.msra.mxu0 0.0
  %718 = vmatpush.msra.mxu0 0.0
  %719 = vmatpush.msra.mxu0 0.0
  %720 = vmatpush.msra.mxu0 0.0
  %721 = vmatpush.msra.mxu0 0.0
  %722 = vmatpush.msra.mxu0 %v700
  %723 = vmatpush.msra.mxu0 %v699
  %724 = vmatpush.msra.mxu0 %v698
  %725 = vmatpush.msra.mxu0 %v697
  %726 = vmatmul.f32.gmra.mxu0 %v708
  %v727 = vpop.f32.mrf.mxu0
  %v728 = vadd.f32 %v703, %v727
  %729 = vdwg.mxu0
  %vm730 = vcmask 7168
  %731 = vst.msk [vmem:[%s7] sm:$0xff] %vm730, %v728
  // Predicated region
  $region30: #{custom_lstm_forward.1} parent=0 // pred_check
    _
  $region31: #{custom_lstm_forward.1} parent=0 // pred_check_branch
    %733 = sbr.rel (0) target = $region33
  $region32: #{custom_lstm_forward.1} parent=0 // pred_region
    _
  $region33: #{custom_lstm_forward.1} parent=0 // pred_fallthru
    _
  // Predicated region
  $region34: #{custom_lstm_forward.1} parent=0 // pred_check
    _
  $region35: #{custom_lstm_forward.1} parent=0 // pred_check_branch
    %735 = sbr.rel (0) target = $region37
  $region36: #{custom_lstm_forward.1} parent=0 // pred_region
    _
  $region37: #{custom_lstm_forward.1} parent=0 // pred_fallthru
    _

</llo_original>
